<compile_context>
chip_gen: v6e
topology: v6e:2x2x1
jax: 0.10.0
libtpu: 0.0.40
codegen_flags: <defaults>
</compile_context>

<pallas_src>
import functools

import jax
import jax.numpy as jnp
from jax.experimental import pallas as pl
from jax.experimental.pallas import tpu as pltpu


def _round_up(x, m):
    return (x + m - 1) // m * m


def _cdiv(a, b):
    return (a + b - 1) // b


def decoder_kernel(z_ref, w_ref, b_ref, out_ref, *, num_layers, latent_pad):
    """Fused MLP: ReLU after every layer except the final dec_mu layer."""
    h = z_ref[...]                                         # (TB, latent_pad) bf16
    for i in range(num_layers):                            # unrolled (4 layers)
        if i == 0:
            # Layer 0 contracts only the real latent rows of the packed weight.
            # latent_pad is a multiple of 16 -> exactly whole bf16 sublane tiles.
            w = w_ref[0, :latent_pad, :]
        else:
            w = w_ref[i]
        acc = jnp.dot(h, w, preferred_element_type=jnp.float32)   # MXU, f32 acc
        acc = acc + b_ref[i]                               # (1, D) f32 bias broadcast
        if i < num_layers - 1:
            # f32 ReLU (v5e-safe), carry hidden state in bf16 between layers.
            h = jnp.maximum(acc, 0.0).astype(jnp.bfloat16)
        else:
            h = acc                                        # dec_mu output stays f32
    out_ref[...] = h.astype(out_ref.dtype)                 # lane-dense (TB, 128) store


def init_decoder_params(key, latent_dims, hidden_dims, out_dims):
    """Deterministic synthetic init matching nn.Linear shapes, stored as (in, out)."""
    dims = [latent_dims] + list(hidden_dims) + [out_dims]
    params = []
    for d_in, d_out in zip(dims[:-1], dims[1:]):
        key, kw, kb = jax.random.split(key, 3)
        bound = 1.0 / jnp.sqrt(d_in)                       # PyTorch default uniform bound
        w = jax.random.uniform(kw, (d_in, d_out), jnp.float32, -bound, bound)
        b = jax.random.uniform(kb, (1, d_out), jnp.float32, -bound, bound)
        params.append((w, b))
    return params


def pack_decoder_params(params):
    """Pack per-layer (W, b) into one padded bf16 weight buffer + one f32 bias buffer.

    Padded weight rows/cols and padded bias lanes stay zero; ReLU preserves 0,
    so padded output lanes remain exactly zero through the network.
    """
    d_pad = max(_round_up(d, 128) for w, _ in params for d in w.shape)
    num_layers = len(params)
    w_pack = jnp.zeros((num_layers, d_pad, d_pad), jnp.float32)
    b_pack = jnp.zeros((num_layers, 1, d_pad), jnp.float32)
    for i, (w, b) in enumerate(params):
        d_in, d_out = w.shape
        w_pack = w_pack.at[i, :d_in, :d_out].set(w)
        b_pack = b_pack.at[i, 0, :d_out].set(b.reshape(-1))
    return w_pack.astype(jnp.bfloat16), b_pack, d_pad


@functools.partial(jax.jit, static_argnames=("out_dims",))
def decoder_forward(z, w_pack, b_pack, out_dims):
    batch, latent = z.shape
    num_layers, d_pad, _ = w_pack.shape

    # Latent padded only to a bf16 sublane tile (16), NOT to 128 lanes.
    latent_pad = _round_up(latent, 16)

    # Batch tiling: balanced tiles (minimal padding), cap 1024 rows, and force
    # >= 2 tiles when batch >= 16 so the parallel axis uses both v7x TensorCores.
    cap = 1024
    n_tiles = max(1, _cdiv(batch, cap))
    if batch >= 16:
        n_tiles = max(n_tiles, 2)
    tb = _round_up(_cdiv(batch, n_tiles), 8)
    batch_p = _round_up(batch, tb)

    # z in bf16; only pad if shapes require it (padded rows/cols are zero).
    z_bf16 = z.astype(jnp.bfloat16)
    if batch_p != batch or latent_pad != latent:
        z_p = (jnp.zeros((batch_p, latent_pad), jnp.bfloat16)
               .at[:batch, :latent].set(z_bf16))
    else:
        z_p = z_bf16

    out = pl.pallas_call(
        functools.partial(decoder_kernel, num_layers=num_layers,
                          latent_pad=latent_pad),
        out_shape=jax.ShapeDtypeStruct((batch_p, d_pad), jnp.float32),
        grid_spec=pltpu.PrefetchScalarGridSpec(
            num_scalar_prefetch=0,
            grid=(batch_p // tb,),
            in_specs=[
                # z advances with the batch grid; last dim is the full (small) latent.
                pl.BlockSpec((tb, latent_pad), lambda i: (i, 0)),
                # Weights / biases: constant index_map -> DMA'd once, VMEM-resident.
                pl.BlockSpec((num_layers, d_pad, d_pad), lambda i: (0, 0, 0)),
                pl.BlockSpec((num_layers, 1, d_pad), lambda i: (0, 0, 0)),
            ],
            out_specs=pl.BlockSpec((tb, d_pad), lambda i: (i, 0)),
        ),
        compiler_params=pltpu.CompilerParams(
            dimension_semantics=("parallel",)),   # shards batch tiles across TCs
    )(z_p, w_pack, b_pack)

    # TODO(synk): for large-scale use, return the padded slab and defer this
    # slice to the consumer to avoid one extra HBM copy.
    return out[:batch, :out_dims]


def decoder_reference(z, params):
    """Pure-JAX reference matching the kernel's bf16-weight / f32-accumulate math."""
    h = z.astype(jnp.bfloat16)
    for idx, (w, b) in enumerate(params):
        acc = jnp.dot(h, w.astype(jnp.bfloat16),
                      preferred_element_type=jnp.float32) + b
        if idx < len(params) - 1:
            h = jnp.maximum(acc, 0.0).astype(jnp.bfloat16)
        else:
            h = acc
    return h


if __name__ == "__main__":
    key = jax.random.PRNGKey(0)

    batch = 8
    latent_dims = 16
    hidden_dims = [16, 32, 64]
    out_dims = 10

    key, kz = jax.random.split(key)
    z = jax.random.normal(kz, (batch, latent_dims), jnp.float32)

    params = init_decoder_params(key, latent_dims, hidden_dims, out_dims)
    w_pack, b_pack, _ = pack_decoder_params(params)

    mu = decoder_forward(z, w_pack, b_pack, out_dims)
    mu = jax.block_until_ready(mu)

    ref = decoder_reference(z, params)
    assert mu.shape == (batch, out_dims)
    assert jnp.allclose(mu, ref, atol=1e-3, rtol=1e-3), "Pallas output mismatch vs reference"

    print("KERNEL_OK")
</pallas_src>

<mosaic_0001>
module attributes {stable_mosaic.version = 11 : i64} {
  func.func @decoder_kernel(%arg0: i32, %arg1: memref<8x16xbf16, #tpu.memory_space<vmem>>, %arg2: memref<4x128x128xbf16, #tpu.memory_space<vmem>>, %arg3: memref<4x1x128xf32, #tpu.memory_space<vmem>>, %arg4: memref<8x128xf32, #tpu.memory_space<vmem>>) attributes {dimension_semantics = [#tpu.dimension_semantics<parallel>], iteration_bounds = array<i64: 1>, scalar_prefetch = 0 : i64, scratch_operands = 0 : i64, tpu.core_type = #tpu.core_type<tc>, window_params = [{transform_indices = @transform_0, window_bounds = array<i64: 8, 16>}, {pipeline_mode = #tpu.pipeline_mode<synchronous>, transform_indices = @transform_1, window_bounds = array<i64: 4, 128, 128>}, {pipeline_mode = #tpu.pipeline_mode<synchronous>, transform_indices = @transform_2, window_bounds = array<i64: 4, 1, 128>}, {transform_indices = @transform_3, window_bounds = array<i64: 8, 128>}]} {
    %c0 = arith.constant 0 : index
    %c0_0 = arith.constant 0 : index
    %0 = vector.load %arg1[%c0, %c0_0] : memref<8x16xbf16, #tpu.memory_space<vmem>>, vector<8x16xbf16>
    %c0_1 = arith.constant 0 : index
    %c0_2 = arith.constant 0 : index
    %c0_3 = arith.constant 0 : index
    %1 = vector.load %arg2[%c0_1, %c0_2, %c0_3] : memref<4x128x128xbf16, #tpu.memory_space<vmem>>, vector<1x16x128xbf16>
    %2 = vector.shape_cast %1 : vector<1x16x128xbf16> to vector<16x128xbf16>
    %cst = arith.constant dense<0.000000e+00> : vector<8x128xf32>
    %3 = tpu.matmul %0, %2, %cst {dimension_numbers = #tpu.dot_dimension_numbers<[1], [0], [0], [1], [0, 0, 1, 1], [], []>} : vector<8x16xbf16>, vector<16x128xbf16>, vector<8x128xf32> -> vector<8x128xf32>
    %c0_4 = arith.constant 0 : index
    %c0_5 = arith.constant 0 : index
    %c0_6 = arith.constant 0 : index
    %4 = vector.load %arg3[%c0_4, %c0_5, %c0_6] : memref<4x1x128xf32, #tpu.memory_space<vmem>>, vector<1x1x128xf32>
    %5 = vector.shape_cast %4 : vector<1x1x128xf32> to vector<1x128xf32>
    %6 = vector.broadcast %5 : vector<1x128xf32> to vector<8x128xf32>
    %7 = arith.addf %3, %6 : vector<8x128xf32>
    %cst_7 = arith.constant 0.000000e+00 : f32
    %8 = vector.broadcast %cst_7 : f32 to vector<8x128xf32>
    %9 = arith.maximumf %7, %8 : vector<8x128xf32>
    %10 = arith.truncf %9 : vector<8x128xf32> to vector<8x128xbf16>
    %c1 = arith.constant 1 : index
    %c0_8 = arith.constant 0 : index
    %c0_9 = arith.constant 0 : index
    %11 = vector.load %arg2[%c1, %c0_8, %c0_9] : memref<4x128x128xbf16, #tpu.memory_space<vmem>>, vector<1x128x128xbf16>
    %12 = vector.shape_cast %11 : vector<1x128x128xbf16> to vector<128x128xbf16>
    %cst_10 = arith.constant dense<0.000000e+00> : vector<8x128xf32>
    %13 = tpu.matmul %10, %12, %cst_10 {dimension_numbers = #tpu.dot_dimension_numbers<[1], [0], [0], [1], [0, 0, 1, 1], [], []>} : vector<8x128xbf16>, vector<128x128xbf16>, vector<8x128xf32> -> vector<8x128xf32>
    %c1_11 = arith.constant 1 : index
    %c0_12 = arith.constant 0 : index
    %c0_13 = arith.constant 0 : index
    %14 = vector.load %arg3[%c1_11, %c0_12, %c0_13] : memref<4x1x128xf32, #tpu.memory_space<vmem>>, vector<1x1x128xf32>
    %15 = vector.shape_cast %14 : vector<1x1x128xf32> to vector<1x128xf32>
    %16 = vector.broadcast %15 : vector<1x128xf32> to vector<8x128xf32>
    %17 = arith.addf %13, %16 : vector<8x128xf32>
    %cst_14 = arith.constant 0.000000e+00 : f32
    %18 = vector.broadcast %cst_14 : f32 to vector<8x128xf32>
    %19 = arith.maximumf %17, %18 : vector<8x128xf32>
    %20 = arith.truncf %19 : vector<8x128xf32> to vector<8x128xbf16>
    %c2 = arith.constant 2 : index
    %c0_15 = arith.constant 0 : index
    %c0_16 = arith.constant 0 : index
    %21 = vector.load %arg2[%c2, %c0_15, %c0_16] : memref<4x128x128xbf16, #tpu.memory_space<vmem>>, vector<1x128x128xbf16>
    %22 = vector.shape_cast %21 : vector<1x128x128xbf16> to vector<128x128xbf16>
    %cst_17 = arith.constant dense<0.000000e+00> : vector<8x128xf32>
    %23 = tpu.matmul %20, %22, %cst_17 {dimension_numbers = #tpu.dot_dimension_numbers<[1], [0], [0], [1], [0, 0, 1, 1], [], []>} : vector<8x128xbf16>, vector<128x128xbf16>, vector<8x128xf32> -> vector<8x128xf32>
    %c2_18 = arith.constant 2 : index
    %c0_19 = arith.constant 0 : index
    %c0_20 = arith.constant 0 : index
    %24 = vector.load %arg3[%c2_18, %c0_19, %c0_20] : memref<4x1x128xf32, #tpu.memory_space<vmem>>, vector<1x1x128xf32>
    %25 = vector.shape_cast %24 : vector<1x1x128xf32> to vector<1x128xf32>
    %26 = vector.broadcast %25 : vector<1x128xf32> to vector<8x128xf32>
    %27 = arith.addf %23, %26 : vector<8x128xf32>
    %cst_21 = arith.constant 0.000000e+00 : f32
    %28 = vector.broadcast %cst_21 : f32 to vector<8x128xf32>
    %29 = arith.maximumf %27, %28 : vector<8x128xf32>
    %30 = arith.truncf %29 : vector<8x128xf32> to vector<8x128xbf16>
    %c3 = arith.constant 3 : index
    %c0_22 = arith.constant 0 : index
    %c0_23 = arith.constant 0 : index
    %31 = vector.load %arg2[%c3, %c0_22, %c0_23] : memref<4x128x128xbf16, #tpu.memory_space<vmem>>, vector<1x128x128xbf16>
    %32 = vector.shape_cast %31 : vector<1x128x128xbf16> to vector<128x128xbf16>
    %cst_24 = arith.constant dense<0.000000e+00> : vector<8x128xf32>
    %33 = tpu.matmul %30, %32, %cst_24 {dimension_numbers = #tpu.dot_dimension_numbers<[1], [0], [0], [1], [0, 0, 1, 1], [], []>} : vector<8x128xbf16>, vector<128x128xbf16>, vector<8x128xf32> -> vector<8x128xf32>
    %c3_25 = arith.constant 3 : index
    %c0_26 = arith.constant 0 : index
    %c0_27 = arith.constant 0 : index
    %34 = vector.load %arg3[%c3_25, %c0_26, %c0_27] : memref<4x1x128xf32, #tpu.memory_space<vmem>>, vector<1x1x128xf32>
    %35 = vector.shape_cast %34 : vector<1x1x128xf32> to vector<1x128xf32>
    %36 = vector.broadcast %35 : vector<1x128xf32> to vector<8x128xf32>
    %37 = arith.addf %33, %36 : vector<8x128xf32>
    %c0_28 = arith.constant 0 : index
    %c0_29 = arith.constant 0 : index
    %38 = vector.load %arg4[%c0_28, %c0_29] : memref<8x128xf32, #tpu.memory_space<vmem>>, vector<8x128xf32>
    tpu.vector_store %arg4[%c0_28, %c0_29], %37 {strides = array<i32>} : memref<8x128xf32, #tpu.memory_space<vmem>>, vector<8x128xf32>,
    return
  }
  func.func @transform_0(%arg0: i32) -> (i32, i32) {
    %c0_i32 = arith.constant 0 : i32
    %c0_i32_0 = arith.constant 0 : i32
    return %arg0, %c0_i32 : i32, i32
  }
  func.func @transform_1(%arg0: i32) -> (i32, i32, i32) {
    %c0_i32 = arith.constant 0 : i32
    %c0_i32_0 = arith.constant 0 : i32
    %c0_i32_1 = arith.constant 0 : i32
    %c0_i32_2 = arith.constant 0 : i32
    return %c0_i32, %c0_i32_0, %c0_i32_1 : i32, i32, i32
  }
  func.func @transform_2(%arg0: i32) -> (i32, i32, i32) {
    %c0_i32 = arith.constant 0 : i32
    %c0_i32_0 = arith.constant 0 : i32
    %c0_i32_1 = arith.constant 0 : i32
    %c0_i32_2 = arith.constant 0 : i32
    return %c0_i32, %c0_i32_0, %c0_i32_1 : i32, i32, i32
  }
  func.func @transform_3(%arg0: i32) -> (i32, i32) {
    %c0_i32 = arith.constant 0 : i32
    %c0_i32_0 = arith.constant 0 : i32
    return %arg0, %c0_i32 : i32, i32
  }
}

</mosaic_0001>

<llo_original>
// kernel: decoder_forward.1
$region0: #{decoder_forward.1}
  #allocation0 [shape = 'u32[]', space=smem, size = 0x4, offset = 0x4, fixed_abs, tag = 'smem constant byte address 0x4 - core index']
  #allocation1 [shape = 'u32[144,128]{1,0:T(1,128)}', space=vmem, size = 0x12000, scoped, tag = 'internal scratch']
  %s0 = inlined_call_operand.vmem [shape: bf16[8,16], index: 0, kind: input, shape index: {}]
  %s1 = inlined_call_operand.hbm [shape: bf16[4,128,128], index: 1, kind: input, shape index: {}]
  %s2 = inlined_call_operand.vmem [shape: f32[4,1,128], index: 2, kind: input, shape index: {}]
  %s3 = inlined_call_operand.hbm [shape: f32[8,128], index: 3, kind: output, shape index: {}]
  %s4 = sld [smem:[#allocation0]]
  $region26: #{decoder_forward.1} parent=0
    _
  %s6 = ssub.s32 1, %s4
  %s7 = scalar_select 0, %s6, %s4
  $region1: #{decoder_forward.1} parent=0
    #allocation2 [shape = 'u8[131072]{0}', space=vmem, size = 0x20000, scoped, tag = 'input window, operand 1, single buffered']
    #allocation3 [shape = 's32[1]{0}', space=sflag, size = 0x4, scoped, tag = 'scoped memory for decoder_forward.1']
    #allocation4 [shape = 's32[1]{0}', space=sflag, size = 0x4, scoped, tag = 'scoped memory for decoder_forward.1']
    #allocation5 [shape = 'u8[4096]{0}', space=vmem, size = 0x1000, scoped, tag = 'output window, operand 0, single buffered']
    %8 = vsyncpa [#allocation3], 0
    %9 = vsyncpa [#allocation4], 0
    // Predicated region
    $region2: #{decoder_forward.1} parent=1 // pred_check
      _
    $region3: #{decoder_forward.1} parent=1 // pred_check_branch
      %11 = sbr.rel (0) target = $region5
    $region4: #{decoder_forward.1} parent=1 // pred_region
      _
    $region5: #{decoder_forward.1} parent=1 // pred_fallthru
      _
    // Predicated region
    $region6: #{decoder_forward.1} parent=1 // pred_check
      _
    $region7: #{decoder_forward.1} parent=1 // pred_check_branch
      %13 = sbr.rel (0) target = $region9
    $region8: #{decoder_forward.1} parent=1 // pred_region
      %s15 = ssub.s32 4096, 4096
      %16 = vsyncadd [#allocation3], %s15
      %s17 = sshll.u32 [#allocation2], 4
      %s18 = int_to_ptr.vmem [resolvable:$true] %s17
      %23 = dma.hbm_to_vmem [thread:$0]  %s1, 4096, %s18, [#allocation3], 64, 64, 4
    $region9: #{decoder_forward.1} parent=1 // pred_fallthru
      _
    // Predicated region
    $region10: #{decoder_forward.1} parent=1 // pred_check
      _
    $region11: #{decoder_forward.1} parent=1 // pred_check_branch
      %25 = sbr.rel (0) target = $region13
    $region12: #{decoder_forward.1} parent=1 // pred_region
      _
    $region13: #{decoder_forward.1} parent=1 // pred_fallthru
      _
    // Predicated region
    $region14: #{decoder_forward.1} parent=1 // pred_check
      _
    $region15: #{decoder_forward.1} parent=1 // pred_check_branch
      %27 = sbr.rel (0) target = $region17
    $region16: #{decoder_forward.1} parent=1 // pred_region
      %28 = dma.done [#allocation3], 4096
    $region17: #{decoder_forward.1} parent=1 // pred_fallthru
      _
    %v30 = vld [vmem:[%s0] sm:$0xf]
    %v31 = vld [vmem:[#allocation2] sm:$0xf]
    %v32 = vld [vmem:[#allocation2 + $0x4] sm:$0xf]
    %v33 = vld [vmem:[%s2] sm:$0x1]
    %v35 = vlaneseq
    %v36 = vshrl.u32 %v35, 7
    %v37 = vsub.s32 0, %v36
    %v38 = vrot.slane %v33, %v37
    %v42 = vunpack.c.l.b16 %v31
    %v43 = vunpack.c.l.b16 %v32
    %v44 = vpack.c.b16 %v43, %v42
    %vm46 = vcmask 130048
    %v48 = vsel %vm46, %v30, 0
    %50 = vmatprep.subr.bf16.mxu0 0
    %51 = vmatpush1.bf16.msra.mxu0 0
    %52 = vmatprep.subr.bf16.mxu0 0
    %53 = vmatpush1.bf16.msra.mxu0 0
    %54 = vmatprep.subr.bf16.mxu0 0
    %55 = vmatpush1.bf16.msra.mxu0 0
    %56 = vmatprep.subr.bf16.mxu0 0
    %57 = vmatpush1.bf16.msra.mxu0 0
    %58 = vmatprep.subr.bf16.mxu0 0
    %59 = vmatpush1.bf16.msra.mxu0 0
    %60 = vmatprep.subr.bf16.mxu0 0
    %61 = vmatpush1.bf16.msra.mxu0 0
    %62 = vmatprep.subr.bf16.mxu0 0
    %63 = vmatpush1.bf16.msra.mxu0 0
    %64 = vmatprep.subr.bf16.mxu0 0
    %65 = vmatpush1.bf16.msra.mxu0 %v44
    %66 = vmatprep.subr.bf16.mxu0 0
    %67 = vmatpush2.bf16.msra.mxu0 0
    %68 = vmatprep.subr.bf16.mxu0 0
    %69 = vmatpush2.bf16.msra.mxu0 0
    %70 = vmatprep.subr.bf16.mxu0 0
    %71 = vmatpush2.bf16.msra.mxu0 0
    %72 = vmatprep.subr.bf16.mxu0 0
    %73 = vmatpush2.bf16.msra.mxu0 0
    %74 = vmatprep.subr.bf16.mxu0 0
    %75 = vmatpush2.bf16.msra.mxu0 0
    %76 = vmatprep.subr.bf16.mxu0 0
    %77 = vmatpush2.bf16.msra.mxu0 0
    %78 = vmatprep.subr.bf16.mxu0 0
    %79 = vmatpush2.bf16.msra.mxu0 0
    %80 = vmatprep.subr.bf16.mxu0 0
    %81 = vmatpush2.bf16.msra.mxu0 0
    %82 = vmatprep.mubr.bf16.mxu0 0
    %83 = vmatmul.mubr.bf16.gmra.mxu0 %v48
    %v84 = vpop.f32.mrf.mxu0
    %v85 = vadd.f32 %v38, %v84
    %v86 = vpop.f32.mrf.mxu0
    %v87 = vpop.f32.mrf.mxu0
    %v88 = vpop.f32.mrf.mxu0
    %89 = vdwg.mxu0
    %v90 = vmax.f32 %v85, 0.0
    %v91 = vpack.c.bf16 %v90, %v90
    %s92 = scalar_lea.vmem [#allocation2], 64
    %v93 = vld [vmem:[%s92] sm:$0xf]
    %v94 = vld [vmem:[%s92 + $0x4] sm:$0xf]
    %v95 = vld [vmem:[%s92 + $0x8] sm:$0xf]
    %v96 = vld [vmem:[%s92 + $0xc] sm:$0xf]
    %v97 = vld [vmem:[%s92 + $0x10] sm:$0xf]
    %v98 = vld [vmem:[%s92 + $0x14] sm:$0xf]
    %v99 = vld [vmem:[%s92 + $0x18] sm:$0xf]
    %v100 = vld [vmem:[%s92 + $0x1c] sm:$0xf]
    %v101 = vld [vmem:[%s92 + $0x20] sm:$0xf]
    %v102 = vld [vmem:[%s92 + $0x24] sm:$0xf]
    %v103 = vld [vmem:[%s92 + $0x28] sm:$0xf]
    %v104 = vld [vmem:[%s92 + $0x2c] sm:$0xf]
    %v105 = vld [vmem:[%s92 + $0x30] sm:$0xf]
    %v106 = vld [vmem:[%s92 + $0x34] sm:$0xf]
    %v107 = vld [vmem:[%s92 + $0x38] sm:$0xf]
    %v108 = vld [vmem:[%s92 + $0x3c] sm:$0xf]
    %s109 = scalar_lea.vmem %s2, 1
    %v110 = vld [vmem:[%s109] sm:$0x1]
    %v112 = vlaneseq
    %v113 = vshrl.u32 %v112, 7
    %v114 = vsub.s32 0, %v113
    %v115 = vrot.slane %v110, %v114
    %v133 = vunpack.c.l.b16 %v93
    %v134 = vunpack.c.l.b16 %v94
    %v135 = vunpack.c.l.b16 %v95
    %v136 = vunpack.c.l.b16 %v96
    %v137 = vunpack.c.l.b16 %v97
    %v138 = vunpack.c.l.b16 %v98
    %v139 = vunpack.c.l.b16 %v99
    %v140 = vunpack.c.l.b16 %v100
    %v141 = vunpack.c.l.b16 %v101
    %v142 = vunpack.c.l.b16 %v102
    %v143 = vunpack.c.l.b16 %v103
    %v144 = vunpack.c.l.b16 %v104
    %v145 = vunpack.c.l.b16 %v105
    %v146 = vunpack.c.l.b16 %v106
    %v147 = vunpack.c.l.b16 %v107
    %v148 = vunpack.c.l.b16 %v108
    %v149 = vpack.c.b16 %v134, %v133
    %v150 = vpack.c.b16 %v136, %v135
    %v151 = vpack.c.b16 %v138, %v137
    %v152 = vpack.c.b16 %v140, %v139
    %v153 = vpack.c.b16 %v142, %v141
    %v154 = vpack.c.b16 %v144, %v143
    %v155 = vpack.c.b16 %v146, %v145
    %v156 = vpack.c.b16 %v148, %v147
    %165 = vmatprep.subr.bf16.mxu0 0
    %166 = vmatpush1.bf16.msra.mxu0 %v156
    %167 = vmatprep.subr.bf16.mxu0 0
    %168 = vmatpush1.bf16.msra.mxu0 %v155
    %169 = vmatprep.subr.bf16.mxu0 0
    %170 = vmatpush1.bf16.msra.mxu0 %v154
    %171 = vmatprep.subr.bf16.mxu0 0
    %172 = vmatpush1.bf16.msra.mxu0 %v153
    %173 = vmatprep.subr.bf16.mxu0 0
    %174 = vmatpush1.bf16.msra.mxu0 %v152
    %175 = vmatprep.subr.bf16.mxu0 0
    %176 = vmatpush1.bf16.msra.mxu0 %v151
    %177 = vmatprep.subr.bf16.mxu0 0
    %178 = vmatpush1.bf16.msra.mxu0 %v150
    %179 = vmatprep.subr.bf16.mxu0 0
    %180 = vmatpush1.bf16.msra.mxu0 %v149
    %181 = vmatprep.subr.bf16.mxu0 0
    %182 = vmatpush2.bf16.msra.mxu0 0
    %183 = vmatprep.subr.bf16.mxu0 0
    %184 = vmatpush2.bf16.msra.mxu0 0
    %185 = vmatprep.subr.bf16.mxu0 0
    %186 = vmatpush2.bf16.msra.mxu0 0
    %187 = vmatprep.subr.bf16.mxu0 0
    %188 = vmatpush2.bf16.msra.mxu0 0
    %189 = vmatprep.subr.bf16.mxu0 0
    %190 = vmatpush2.bf16.msra.mxu0 0
    %191 = vmatprep.subr.bf16.mxu0 0
    %192 = vmatpush2.bf16.msra.mxu0 0
    %193 = vmatprep.subr.bf16.mxu0 0
    %194 = vmatpush2.bf16.msra.mxu0 0
    %195 = vmatprep.subr.bf16.mxu0 0
    %196 = vmatpush2.bf16.msra.mxu0 0
    %197 = vmatprep.mubr.bf16.mxu0 0
    %198 = vmatmul.mubr.bf16.gmra.mxu0 %v91
    %v199 = vpop.f32.mrf.mxu0
    %v200 = vadd.f32 %v115, %v199
    %v201 = vpop.f32.mrf.mxu0
    %v202 = vpop.f32.mrf.mxu0
    %v203 = vpop.f32.mrf.mxu0
    %204 = vdwg.mxu0
    %v205 = vmax.f32 %v200, 0.0
    %v206 = vpack.c.bf16 %v205, %v205
    %s207 = scalar_lea.vmem [#allocation2], 128
    %v208 = vld [vmem:[%s207] sm:$0xf]
    %v209 = vld [vmem:[%s207 + $0x4] sm:$0xf]
    %v210 = vld [vmem:[%s207 + $0x8] sm:$0xf]
    %v211 = vld [vmem:[%s207 + $0xc] sm:$0xf]
    %v212 = vld [vmem:[%s207 + $0x10] sm:$0xf]
    %v213 = vld [vmem:[%s207 + $0x14] sm:$0xf]
    %v214 = vld [vmem:[%s207 + $0x18] sm:$0xf]
    %v215 = vld [vmem:[%s207 + $0x1c] sm:$0xf]
    %v216 = vld [vmem:[%s207 + $0x20] sm:$0xf]
    %v217 = vld [vmem:[%s207 + $0x24] sm:$0xf]
    %v218 = vld [vmem:[%s207 + $0x28] sm:$0xf]
    %v219 = vld [vmem:[%s207 + $0x2c] sm:$0xf]
    %v220 = vld [vmem:[%s207 + $0x30] sm:$0xf]
    %v221 = vld [vmem:[%s207 + $0x34] sm:$0xf]
    %v222 = vld [vmem:[%s207 + $0x38] sm:$0xf]
    %v223 = vld [vmem:[%s207 + $0x3c] sm:$0xf]
    %s224 = scalar_lea.vmem %s2, 2
    %v225 = vld [vmem:[%s224] sm:$0x1]
    %v227 = vlaneseq
    %v228 = vshrl.u32 %v227, 7
    %v229 = vsub.s32 0, %v228
    %v230 = vrot.slane %v225, %v229
    %v248 = vunpack.c.l.b16 %v208
    %v249 = vunpack.c.l.b16 %v209
    %v250 = vunpack.c.l.b16 %v210
    %v251 = vunpack.c.l.b16 %v211
    %v252 = vunpack.c.l.b16 %v212
    %v253 = vunpack.c.l.b16 %v213
    %v254 = vunpack.c.l.b16 %v214
    %v255 = vunpack.c.l.b16 %v215
    %v256 = vunpack.c.l.b16 %v216
    %v257 = vunpack.c.l.b16 %v217
    %v258 = vunpack.c.l.b16 %v218
    %v259 = vunpack.c.l.b16 %v219
    %v260 = vunpack.c.l.b16 %v220
    %v261 = vunpack.c.l.b16 %v221
    %v262 = vunpack.c.l.b16 %v222
    %v263 = vunpack.c.l.b16 %v223
    %v264 = vpack.c.b16 %v249, %v248
    %v265 = vpack.c.b16 %v251, %v250
    %v266 = vpack.c.b16 %v253, %v252
    %v267 = vpack.c.b16 %v255, %v254
    %v268 = vpack.c.b16 %v257, %v256
    %v269 = vpack.c.b16 %v259, %v258
    %v270 = vpack.c.b16 %v261, %v260
    %v271 = vpack.c.b16 %v263, %v262
    %280 = vmatprep.subr.bf16.mxu0 0
    %281 = vmatpush1.bf16.msra.mxu0 %v271
    %282 = vmatprep.subr.bf16.mxu0 0
    %283 = vmatpush1.bf16.msra.mxu0 %v270
    %284 = vmatprep.subr.bf16.mxu0 0
    %285 = vmatpush1.bf16.msra.mxu0 %v269
    %286 = vmatprep.subr.bf16.mxu0 0
    %287 = vmatpush1.bf16.msra.mxu0 %v268
    %288 = vmatprep.subr.bf16.mxu0 0
    %289 = vmatpush1.bf16.msra.mxu0 %v267
    %290 = vmatprep.subr.bf16.mxu0 0
    %291 = vmatpush1.bf16.msra.mxu0 %v266
    %292 = vmatprep.subr.bf16.mxu0 0
    %293 = vmatpush1.bf16.msra.mxu0 %v265
    %294 = vmatprep.subr.bf16.mxu0 0
    %295 = vmatpush1.bf16.msra.mxu0 %v264
    %296 = vmatprep.subr.bf16.mxu0 0
    %297 = vmatpush2.bf16.msra.mxu0 0
    %298 = vmatprep.subr.bf16.mxu0 0
    %299 = vmatpush2.bf16.msra.mxu0 0
    %300 = vmatprep.subr.bf16.mxu0 0
    %301 = vmatpush2.bf16.msra.mxu0 0
    %302 = vmatprep.subr.bf16.mxu0 0
    %303 = vmatpush2.bf16.msra.mxu0 0
    %304 = vmatprep.subr.bf16.mxu0 0
    %305 = vmatpush2.bf16.msra.mxu0 0
    %306 = vmatprep.subr.bf16.mxu0 0
    %307 = vmatpush2.bf16.msra.mxu0 0
    %308 = vmatprep.subr.bf16.mxu0 0
    %309 = vmatpush2.bf16.msra.mxu0 0
    %310 = vmatprep.subr.bf16.mxu0 0
    %311 = vmatpush2.bf16.msra.mxu0 0
    %312 = vmatprep.mubr.bf16.mxu0 0
    %313 = vmatmul.mubr.bf16.gmra.mxu0 %v206
    %v314 = vpop.f32.mrf.mxu0
    %v315 = vadd.f32 %v230, %v314
    %v316 = vpop.f32.mrf.mxu0
    %v317 = vpop.f32.mrf.mxu0
    %v318 = vpop.f32.mrf.mxu0
    %319 = vdwg.mxu0
    %v320 = vmax.f32 %v315, 0.0
    %v321 = vpack.c.bf16 %v320, %v320
    %s322 = scalar_lea.vmem [#allocation2], 192
    %v323 = vld [vmem:[%s322] sm:$0xf]
    %v324 = vld [vmem:[%s322 + $0x4] sm:$0xf]
    %v325 = vld [vmem:[%s322 + $0x8] sm:$0xf]
    %v326 = vld [vmem:[%s322 + $0xc] sm:$0xf]
    %v327 = vld [vmem:[%s322 + $0x10] sm:$0xf]
    %v328 = vld [vmem:[%s322 + $0x14] sm:$0xf]
    %v329 = vld [vmem:[%s322 + $0x18] sm:$0xf]
    %v330 = vld [vmem:[%s322 + $0x1c] sm:$0xf]
    %v331 = vld [vmem:[%s322 + $0x20] sm:$0xf]
    %v332 = vld [vmem:[%s322 + $0x24] sm:$0xf]
    %v333 = vld [vmem:[%s322 + $0x28] sm:$0xf]
    %v334 = vld [vmem:[%s322 + $0x2c] sm:$0xf]
    %v335 = vld [vmem:[%s322 + $0x30] sm:$0xf]
    %v336 = vld [vmem:[%s322 + $0x34] sm:$0xf]
    %v337 = vld [vmem:[%s322 + $0x38] sm:$0xf]
    %v338 = vld [vmem:[%s322 + $0x3c] sm:$0xf]
    %s339 = scalar_lea.vmem %s2, 3
    %v340 = vld [vmem:[%s339] sm:$0x1]
    %v342 = vlaneseq
    %v343 = vshrl.u32 %v342, 7
    %v344 = vsub.s32 0, %v343
    %v345 = vrot.slane %v340, %v344
    %v363 = vunpack.c.l.b16 %v323
    %v364 = vunpack.c.l.b16 %v324
    %v365 = vunpack.c.l.b16 %v325
    %v366 = vunpack.c.l.b16 %v326
    %v367 = vunpack.c.l.b16 %v327
    %v368 = vunpack.c.l.b16 %v328
    %v369 = vunpack.c.l.b16 %v329
    %v370 = vunpack.c.l.b16 %v330
    %v371 = vunpack.c.l.b16 %v331
    %v372 = vunpack.c.l.b16 %v332
    %v373 = vunpack.c.l.b16 %v333
    %v374 = vunpack.c.l.b16 %v334
    %v375 = vunpack.c.l.b16 %v335
    %v376 = vunpack.c.l.b16 %v336
    %v377 = vunpack.c.l.b16 %v337
    %v378 = vunpack.c.l.b16 %v338
    %v379 = vpack.c.b16 %v364, %v363
    %v380 = vpack.c.b16 %v366, %v365
    %v381 = vpack.c.b16 %v368, %v367
    %v382 = vpack.c.b16 %v370, %v369
    %v383 = vpack.c.b16 %v372, %v371
    %v384 = vpack.c.b16 %v374, %v373
    %v385 = vpack.c.b16 %v376, %v375
    %v386 = vpack.c.b16 %v378, %v377
    %395 = vmatprep.subr.bf16.mxu0 0
    %396 = vmatpush1.bf16.msra.mxu0 %v386
    %397 = vmatprep.subr.bf16.mxu0 0
    %398 = vmatpush1.bf16.msra.mxu0 %v385
    %399 = vmatprep.subr.bf16.mxu0 0
    %400 = vmatpush1.bf16.msra.mxu0 %v384
    %401 = vmatprep.subr.bf16.mxu0 0
    %402 = vmatpush1.bf16.msra.mxu0 %v383
    %403 = vmatprep.subr.bf16.mxu0 0
    %404 = vmatpush1.bf16.msra.mxu0 %v382
    %405 = vmatprep.subr.bf16.mxu0 0
    %406 = vmatpush1.bf16.msra.mxu0 %v381
    %407 = vmatprep.subr.bf16.mxu0 0
    %408 = vmatpush1.bf16.msra.mxu0 %v380
    %409 = vmatprep.subr.bf16.mxu0 0
    %410 = vmatpush1.bf16.msra.mxu0 %v379
    %411 = vmatprep.subr.bf16.mxu0 0
    %412 = vmatpush2.bf16.msra.mxu0 0
    %413 = vmatprep.subr.bf16.mxu0 0
    %414 = vmatpush2.bf16.msra.mxu0 0
    %415 = vmatprep.subr.bf16.mxu0 0
    %416 = vmatpush2.bf16.msra.mxu0 0
    %417 = vmatprep.subr.bf16.mxu0 0
    %418 = vmatpush2.bf16.msra.mxu0 0
    %419 = vmatprep.subr.bf16.mxu0 0
    %420 = vmatpush2.bf16.msra.mxu0 0
    %421 = vmatprep.subr.bf16.mxu0 0
    %422 = vmatpush2.bf16.msra.mxu0 0
    %423 = vmatprep.subr.bf16.mxu0 0
    %424 = vmatpush2.bf16.msra.mxu0 0
    %425 = vmatprep.subr.bf16.mxu0 0
    %426 = vmatpush2.bf16.msra.mxu0 0
    %427 = vmatprep.mubr.bf16.mxu0 0
    %428 = vmatmul.mubr.bf16.gmra.mxu0 %v321
    %v429 = vpop.f32.mrf.mxu0
    %v430 = vadd.f32 %v345, %v429
    %v431 = vpop.f32.mrf.mxu0
    %v432 = vpop.f32.mrf.mxu0
    %v433 = vpop.f32.mrf.mxu0
    %434 = vdwg.mxu0
    %435 = vst [vmem:[#allocation5] sm:$0xff] %v430
    // Predicated region
    $region18: #{decoder_forward.1} parent=1 // pred_check
      _
    $region19: #{decoder_forward.1} parent=1 // pred_check_branch
      %437 = sbr.rel (0) target = $region21
    $region20: #{decoder_forward.1} parent=1 // pred_region
      %s439 = ssub.s32 128, 128
      %440 = vsyncadd [#allocation4], %s439
      %s442 = sshll.u32 [#allocation5], 4
      %s443 = int_to_ptr.vmem [resolvable:$true] %s442
      %445 = dma.vmem_to_hbm [thread:$0]  %s443, 128, %s3, [#allocation4]
    $region21: #{decoder_forward.1} parent=1 // pred_fallthru
      _
    // Predicated region
    $region22: #{decoder_forward.1} parent=1 // pred_check
      _
    $region23: #{decoder_forward.1} parent=1 // pred_check_branch
      %447 = sbr.rel (0) target = $region25
    $region24: #{decoder_forward.1} parent=1 // pred_region
      %448 = dma.done [#allocation4], 128
    $region25: #{decoder_forward.1} parent=1 // pred_fallthru
      _
    %449 = vsyncpa [#allocation3], 1
    %450 = vsyncpa [#allocation4], 1

</llo_original>
